<compile_context>
chip_gen: v7x
topology: tpu7x:2x2x1
jax: 0.10.0
libtpu: 0.0.40
codegen_flags: <defaults>
</compile_context>

<pallas_src>
import functools
import math

import jax
import jax.numpy as jnp
from jax.experimental import pallas as pl
from jax.experimental.pallas import tpu as pltpu


_FUSED_VMEM_BUDGET = 44 << 20      # above this, switch to layer streaming
_VMEM_LIMIT_CAP = 56 << 20         # headroom under v7x's 64 MiB physical VMEM


# =============================== kernel bodies ===============================

def _leaky_linear(h_f32, w_bf16, b_f32, negative_slope):
    """One hidden layer: (h @ W + b) then LeakyReLU, f32 accumulation."""
    z = jnp.dot(h_f32.astype(jnp.bfloat16), w_bf16,
                preferred_element_type=jnp.float32) + b_f32
    return jnp.maximum(z, negative_slope * z)          # valid: negative_slope > 0


def _fused_kernel(x_ref, wr_ref, br_ref, wl_ref, bl_ref, o_ref, *,
                  nlayers, negative_slope, unroll_threshold):
    """All weights VMEM-resident; one batch tile per grid step.

    x_ref  : (tb, F)          wr_ref : (F, H)   br_ref : (1, H)
    wl_ref : (L, H, H)        bl_ref : (L, 1, H)
    o_ref  : (tb, H)
    """
    x32 = x_ref[...].astype(jnp.float32)
    res = jnp.dot(x32.astype(jnp.bfloat16), wr_ref[...],
                  preferred_element_type=jnp.float32) + br_ref[...]

    if nlayers <= unroll_threshold:
        h = x32
        for i in range(nlayers):                        # static unroll (small L)
            h = _leaky_linear(h, wl_ref[i], bl_ref[i], negative_slope)
    else:                                               # deep: bounded live ranges
        def body(i, h):
            return _leaky_linear(h, wl_ref[i], bl_ref[i], negative_slope)
        h = jax.lax.fori_loop(0, nlayers, body, x32)

    o_ref[...] = (res + h).astype(o_ref.dtype)


def _stream_kernel(x_ref, wr_ref, br_ref, wl_ref, bl_ref, o_ref,
                   res_acc, h_acc, *, negative_slope):
    """Layer-streaming path: grid = (batch_tiles, nlayers), wl block (1, H, H).

    Layer i+1 weights are DMA'd (double-buffered by the pipeline) while layer i
    runs on the MXU; h / residual live in VMEM scratch across layer steps.
    """
    l = pl.program_id(1)

    @pl.when(l == 0)
    def _():
        x32 = x_ref[...].astype(jnp.float32)
        res_acc[...] = jnp.dot(x32.astype(jnp.bfloat16), wr_ref[...],
                               preferred_element_type=jnp.float32) + br_ref[...]
        h_acc[...] = x32

    h_acc[...] = _leaky_linear(h_acc[...], wl_ref[0], bl_ref[0], negative_slope)

    @pl.when(l == pl.num_programs(1) - 1)
    def _():
        o_ref[...] = (res_acc[...] + h_acc[...]).astype(o_ref.dtype)


# ================================== wrapper ==================================

def _pick_block_rows(batch):
    if batch <= 128:
        return batch                 # single lane-dense block (full batch)
    if batch % 256 == 0 and batch >= 512:
        return 256                   # bigger LHS tile for v6e's 256x256 MXU
    return 128                       # keeps >=2 grid steps for B>=256 (v7x megacore)


def _vmem_limit(estimate_bytes):
    return int(min(max(estimate_bytes * 3 // 2 + (8 << 20), 32 << 20),
                   _VMEM_LIMIT_CAP))


def resnet_dense_forward(x, params, *, negative_slope=0.01,
                         force_stream=False, unroll_threshold=8):
    """ResNetDense.forward as a single fused pallas_call."""
    B, Fin = x.shape
    wr = params["w_res"].astype(jnp.bfloat16)      # (F, H)  bf16 MXU path
    wl = params["w_layers"].astype(jnp.bfloat16)   # (L, H, H)
    br = params["b_res"].astype(jnp.float32)       # (1, H)  f32 epilogue
    bl = params["b_layers"].astype(jnp.float32)    # (L, 1, H)
    nlayers, H, H2 = wl.shape
    Hout = wr.shape[1]
    assert Fin == H == H2 == Hout, "ResNetDense requires input_size == hidden_size"
    assert nlayers >= 1

    tb = _pick_block_rows(B)
    n_row_blocks = pl.cdiv(B, tb)
    Bp = n_row_blocks * tb
    if Bp != B:                                    # ragged batch: pad, slice later
        x = jnp.pad(x, ((0, Bp - B), (0, 0)))

    xi = x.dtype.itemsize
    act_bytes = 2 * tb * Fin * xi + 2 * tb * H * 4 + 4 * tb * H * 4
    bias_bytes = (nlayers + 1) * H * 4
    fused_est = (nlayers + 1) * H * H * 2 + bias_bytes + act_bytes
    use_stream = force_stream or fused_est > _FUSED_VMEM_BUDGET

    if not use_stream:
        out = pl.pallas_call(
            functools.partial(_fused_kernel, nlayers=nlayers,
                              negative_slope=negative_slope,
                              unroll_threshold=unroll_threshold),
            grid=(n_row_blocks,),
            in_specs=[
                pl.BlockSpec((tb, Fin), lambda i: (i, 0)),            # x (tiled)
                pl.BlockSpec(memory_space=pltpu.MemorySpace.VMEM),    # W_res (resident)
                pl.BlockSpec(memory_space=pltpu.MemorySpace.VMEM),    # b_res
                pl.BlockSpec(memory_space=pltpu.MemorySpace.VMEM),    # stacked W_i
                pl.BlockSpec(memory_space=pltpu.MemorySpace.VMEM),    # stacked b_i
            ],
            out_specs=pl.BlockSpec((tb, H), lambda i: (i, 0)),
            out_shape=jax.ShapeDtypeStruct((Bp, H), jnp.float32),
            compiler_params=pltpu.CompilerParams(
                dimension_semantics=("parallel",),
                vmem_limit_bytes=_vmem_limit(fused_est)),
        )(x, wr, br, wl, bl)
    else:
        stream_est = 3 * H * H * 2 + bias_bytes + act_bytes + 2 * tb * H * 4
        out = pl.pallas_call(
            functools.partial(_stream_kernel, negative_slope=negative_slope),
            grid=(n_row_blocks, nlayers),
            in_specs=[
                pl.BlockSpec((tb, Fin), lambda i, l: (i, 0)),         # x (no re-fetch over l)
                pl.BlockSpec(memory_space=pltpu.MemorySpace.VMEM),    # W_res
                pl.BlockSpec(memory_space=pltpu.MemorySpace.VMEM),    # b_res
                pl.BlockSpec((1, H, H), lambda i, l: (l, 0, 0)),      # W_l streamed
                pl.BlockSpec((1, 1, H), lambda i, l: (l, 0, 0)),      # b_l streamed
            ],
            out_specs=pl.BlockSpec((tb, H), lambda i, l: (i, 0)),
            out_shape=jax.ShapeDtypeStruct((Bp, H), jnp.float32),
            scratch_shapes=[pltpu.VMEM((tb, H), jnp.float32),         # residual
                            pltpu.VMEM((tb, H), jnp.float32)],        # h carry
            compiler_params=pltpu.CompilerParams(
                dimension_semantics=("parallel", "arbitrary"),
                vmem_limit_bytes=_vmem_limit(stream_est)),
        )(x, wr, br, wl, bl)

    return out if Bp == B else out[:B]


# ============================ pure-JAX reference =============================

def resnet_dense_reference(x, params, negative_slope=0.01):
    wr = params["w_res"].astype(jnp.float32)
    br = params["b_res"].astype(jnp.float32)
    wl = params["w_layers"].astype(jnp.float32)
    bl = params["b_layers"].astype(jnp.float32)
    res = x @ wr + br[0]
    h = x
    for i in range(wl.shape[0]):
        h = h @ wl[i] + bl[i, 0]
        h = jnp.where(h >= 0.0, h, negative_slope * h)
    return res + h


# ============================ deterministic init =============================

def init_params(key, input_size, hidden_size, nlayers):
    """Torch-style Linear init: U(-1/sqrt(fan_in), 1/sqrt(fan_in)); weights bf16."""
    k_rw, k_rb, k_lw, k_lb = jax.random.split(key, 4)
    bd_res = 1.0 / math.sqrt(input_size)
    bd_hid = 1.0 / math.sqrt(hidden_size)
    return {
        "w_res": jax.random.uniform(k_rw, (input_size, hidden_size),
                                    jnp.float32, -bd_res, bd_res).astype(jnp.bfloat16),
        "b_res": jax.random.uniform(k_rb, (1, hidden_size),
                                    jnp.float32, -bd_res, bd_res),
        "w_layers": jax.random.uniform(k_lw, (nlayers, hidden_size, hidden_size),
                                       jnp.float32, -bd_hid, bd_hid).astype(jnp.bfloat16),
        "b_layers": jax.random.uniform(k_lb, (nlayers, 1, hidden_size),
                                       jnp.float32, -bd_hid, bd_hid),
    }


# ==================================== main ===================================

if __name__ == "__main__":
    key = jax.random.PRNGKey(0)
    k_param, k_x1, k_x2 = jax.random.split(key, 3)

    # Small, lane-dense shapes: batch 16, input_size == hidden_size == 128, 3 layers.
    B, FEATURES, NLAYERS = 16, 128, 3
    params = init_params(k_param, FEATURES, FEATURES, NLAYERS)
    x = jax.random.normal(k_x1, (B, FEATURES), dtype=jnp.float32)

    fwd = jax.jit(resnet_dense_forward,
                  static_argnames=("negative_slope", "force_stream",
                                   "unroll_threshold"))

    ref = resnet_dense_reference(x, params)

    def check(out, name):
        assert out.shape == ref.shape, (name, out.shape)
        assert bool(jnp.all(jnp.isfinite(out))), name
        rel = float(jnp.max(jnp.abs(out - ref)) / (jnp.max(jnp.abs(ref)) + 1e-6))
        assert rel < 2e-2, (name, rel)

    # Path A: fully fused, weights VMEM-resident, static unroll.
    out_a = fwd(x, params)
    jax.block_until_ready(out_a)
    check(out_a, "fused")

    # Path B: layer-streaming (forced at small shapes to validate the v7x fallback).
    out_b = fwd(x, params, force_stream=True)
    jax.block_until_ready(out_b)
    check(out_b, "stream")

    # Path A with the fori_loop deep-network variant (threshold forced low).
    out_c = fwd(x, params, unroll_threshold=1)
    jax.block_until_ready(out_c)
    check(out_c, "fori")

    # Ragged batch: exercises padding + multi-step "parallel" grid (200 -> 2x128).
    B2 = 200
    x2 = jax.random.normal(k_x2, (B2, FEATURES), dtype=jnp.float32)
    ref2 = resnet_dense_reference(x2, params)
    out_d = fwd(x2, params)
    jax.block_until_ready(out_d)
    assert out_d.shape == ref2.shape
    rel2 = float(jnp.max(jnp.abs(out_d - ref2)) / (jnp.max(jnp.abs(ref2)) + 1e-6))
    assert rel2 < 2e-2, rel2

    print("KERNEL_OK")
</pallas_src>

<mosaic_0001>
module attributes {stable_mosaic.version = 11 : i64} {
  func.func @_fused_kernel(%arg0: i32, %arg1: memref<16x128xf32, #tpu.memory_space<vmem>>, %arg2: memref<128x128xbf16, #tpu.memory_space<vmem>>, %arg3: memref<1x128xf32, #tpu.memory_space<vmem>>, %arg4: memref<3x128x128xbf16, #tpu.memory_space<vmem>>, %arg5: memref<3x1x128xf32, #tpu.memory_space<vmem>>, %arg6: memref<16x128xf32, #tpu.memory_space<vmem>>) attributes {dimension_semantics = [#tpu.dimension_semantics<parallel>], iteration_bounds = array<i64: 1>, scalar_prefetch = 0 : i64, scratch_operands = 0 : i64, tpu.core_type = #tpu.core_type<tc>, window_params = [{transform_indices = @transform_0, window_bounds = array<i64: 16, 128>}, {pipeline_mode = #tpu.pipeline_mode<synchronous>, transform_indices = @transform_1, window_bounds = array<i64: 128, 128>}, {pipeline_mode = #tpu.pipeline_mode<synchronous>, transform_indices = @transform_2, window_bounds = array<i64: 1, 128>}, {pipeline_mode = #tpu.pipeline_mode<synchronous>, transform_indices = @transform_3, window_bounds = array<i64: 3, 128, 128>}, {pipeline_mode = #tpu.pipeline_mode<synchronous>, transform_indices = @transform_4, window_bounds = array<i64: 3, 1, 128>}, {transform_indices = @transform_5, window_bounds = array<i64: 16, 128>}]} {
    %c0 = arith.constant 0 : index
    %c0_0 = arith.constant 0 : index
    %0 = vector.load %arg1[%c0, %c0_0] : memref<16x128xf32, #tpu.memory_space<vmem>>, vector<16x128xf32>
    %1 = arith.truncf %0 : vector<16x128xf32> to vector<16x128xbf16>
    %c0_1 = arith.constant 0 : index
    %c0_2 = arith.constant 0 : index
    %2 = vector.load %arg2[%c0_1, %c0_2] : memref<128x128xbf16, #tpu.memory_space<vmem>>, vector<128x128xbf16>
    %cst = arith.constant dense<0.000000e+00> : vector<16x128xf32>
    %3 = tpu.matmul %1, %2, %cst {dimension_numbers = #tpu.dot_dimension_numbers<[1], [0], [0], [1], [0, 0, 1, 1], [], []>} : vector<16x128xbf16>, vector<128x128xbf16>, vector<16x128xf32> -> vector<16x128xf32>
    %c0_3 = arith.constant 0 : index
    %c0_4 = arith.constant 0 : index
    %4 = vector.load %arg3[%c0_3, %c0_4] : memref<1x128xf32, #tpu.memory_space<vmem>>, vector<1x128xf32>
    %5 = vector.broadcast %4 : vector<1x128xf32> to vector<16x128xf32>
    %6 = arith.addf %3, %5 : vector<16x128xf32>
    %c0_5 = arith.constant 0 : index
    %c0_6 = arith.constant 0 : index
    %c0_7 = arith.constant 0 : index
    %7 = vector.load %arg4[%c0_5, %c0_6, %c0_7] : memref<3x128x128xbf16, #tpu.memory_space<vmem>>, vector<1x128x128xbf16>
    %8 = vector.shape_cast %7 : vector<1x128x128xbf16> to vector<128x128xbf16>
    %c0_8 = arith.constant 0 : index
    %c0_9 = arith.constant 0 : index
    %c0_10 = arith.constant 0 : index
    %9 = vector.load %arg5[%c0_8, %c0_9, %c0_10] : memref<3x1x128xf32, #tpu.memory_space<vmem>>, vector<1x1x128xf32>
    %10 = vector.shape_cast %9 : vector<1x1x128xf32> to vector<1x128xf32>
    %11 = arith.truncf %0 : vector<16x128xf32> to vector<16x128xbf16>
    %cst_11 = arith.constant dense<0.000000e+00> : vector<16x128xf32>
    %12 = tpu.matmul %11, %8, %cst_11 {dimension_numbers = #tpu.dot_dimension_numbers<[1], [0], [0], [1], [0, 0, 1, 1], [], []>} : vector<16x128xbf16>, vector<128x128xbf16>, vector<16x128xf32> -> vector<16x128xf32>
    %13 = vector.broadcast %10 : vector<1x128xf32> to vector<16x128xf32>
    %14 = arith.addf %12, %13 : vector<16x128xf32>
    %cst_12 = arith.constant 0.00999999977 : f32
    %15 = vector.broadcast %cst_12 : f32 to vector<16x128xf32>
    %16 = arith.mulf %15, %14 : vector<16x128xf32>
    %17 = arith.maximumf %14, %16 : vector<16x128xf32>
    %c1 = arith.constant 1 : index
    %c0_13 = arith.constant 0 : index
    %c0_14 = arith.constant 0 : index
    %18 = vector.load %arg4[%c1, %c0_13, %c0_14] : memref<3x128x128xbf16, #tpu.memory_space<vmem>>, vector<1x128x128xbf16>
    %19 = vector.shape_cast %18 : vector<1x128x128xbf16> to vector<128x128xbf16>
    %c1_15 = arith.constant 1 : index
    %c0_16 = arith.constant 0 : index
    %c0_17 = arith.constant 0 : index
    %20 = vector.load %arg5[%c1_15, %c0_16, %c0_17] : memref<3x1x128xf32, #tpu.memory_space<vmem>>, vector<1x1x128xf32>
    %21 = vector.shape_cast %20 : vector<1x1x128xf32> to vector<1x128xf32>
    %22 = arith.truncf %17 : vector<16x128xf32> to vector<16x128xbf16>
    %cst_18 = arith.constant dense<0.000000e+00> : vector<16x128xf32>
    %23 = tpu.matmul %22, %19, %cst_18 {dimension_numbers = #tpu.dot_dimension_numbers<[1], [0], [0], [1], [0, 0, 1, 1], [], []>} : vector<16x128xbf16>, vector<128x128xbf16>, vector<16x128xf32> -> vector<16x128xf32>
    %24 = vector.broadcast %21 : vector<1x128xf32> to vector<16x128xf32>
    %25 = arith.addf %23, %24 : vector<16x128xf32>
    %cst_19 = arith.constant 0.00999999977 : f32
    %26 = vector.broadcast %cst_19 : f32 to vector<16x128xf32>
    %27 = arith.mulf %26, %25 : vector<16x128xf32>
    %28 = arith.maximumf %25, %27 : vector<16x128xf32>
    %c2 = arith.constant 2 : index
    %c0_20 = arith.constant 0 : index
    %c0_21 = arith.constant 0 : index
    %29 = vector.load %arg4[%c2, %c0_20, %c0_21] : memref<3x128x128xbf16, #tpu.memory_space<vmem>>, vector<1x128x128xbf16>
    %30 = vector.shape_cast %29 : vector<1x128x128xbf16> to vector<128x128xbf16>
    %c2_22 = arith.constant 2 : index
    %c0_23 = arith.constant 0 : index
    %c0_24 = arith.constant 0 : index
    %31 = vector.load %arg5[%c2_22, %c0_23, %c0_24] : memref<3x1x128xf32, #tpu.memory_space<vmem>>, vector<1x1x128xf32>
    %32 = vector.shape_cast %31 : vector<1x1x128xf32> to vector<1x128xf32>
    %33 = arith.truncf %28 : vector<16x128xf32> to vector<16x128xbf16>
    %cst_25 = arith.constant dense<0.000000e+00> : vector<16x128xf32>
    %34 = tpu.matmul %33, %30, %cst_25 {dimension_numbers = #tpu.dot_dimension_numbers<[1], [0], [0], [1], [0, 0, 1, 1], [], []>} : vector<16x128xbf16>, vector<128x128xbf16>, vector<16x128xf32> -> vector<16x128xf32>
    %35 = vector.broadcast %32 : vector<1x128xf32> to vector<16x128xf32>
    %36 = arith.addf %34, %35 : vector<16x128xf32>
    %cst_26 = arith.constant 0.00999999977 : f32
    %37 = vector.broadcast %cst_26 : f32 to vector<16x128xf32>
    %38 = arith.mulf %37, %36 : vector<16x128xf32>
    %39 = arith.maximumf %36, %38 : vector<16x128xf32>
    %40 = arith.addf %6, %39 : vector<16x128xf32>
    %c0_27 = arith.constant 0 : index
    %c0_28 = arith.constant 0 : index
    %41 = vector.load %arg6[%c0_27, %c0_28] : memref<16x128xf32, #tpu.memory_space<vmem>>, vector<16x128xf32>
    tpu.vector_store %arg6[%c0_27, %c0_28], %40 {strides = array<i32>} : memref<16x128xf32, #tpu.memory_space<vmem>>, vector<16x128xf32>,
    return
  }
  func.func @transform_0(%arg0: i32) -> (i32, i32) {
    %c0_i32 = arith.constant 0 : i32
    %c0_i32_0 = arith.constant 0 : i32
    return %arg0, %c0_i32 : i32, i32
  }
  func.func @transform_1(%arg0: i32) -> (i32, i32) {
    %c0_i32 = arith.constant 0 : i32
    %c0_i32_0 = arith.constant 0 : i32
    %c0_i32_1 = arith.constant 0 : i32
    return %c0_i32, %c0_i32_0 : i32, i32
  }
  func.func @transform_2(%arg0: i32) -> (i32, i32) {
    %c0_i32 = arith.constant 0 : i32
    %c0_i32_0 = arith.constant 0 : i32
    %c0_i32_1 = arith.constant 0 : i32
    return %c0_i32, %c0_i32_0 : i32, i32
  }
  func.func @transform_3(%arg0: i32) -> (i32, i32, i32) {
    %c0_i32 = arith.constant 0 : i32
    %c0_i32_0 = arith.constant 0 : i32
    %c0_i32_1 = arith.constant 0 : i32
    %c0_i32_2 = arith.constant 0 : i32
    return %c0_i32, %c0_i32_0, %c0_i32_1 : i32, i32, i32
  }
  func.func @transform_4(%arg0: i32) -> (i32, i32, i32) {
    %c0_i32 = arith.constant 0 : i32
    %c0_i32_0 = arith.constant 0 : i32
    %c0_i32_1 = arith.constant 0 : i32
    %c0_i32_2 = arith.constant 0 : i32
    return %c0_i32, %c0_i32_0, %c0_i32_1 : i32, i32, i32
  }
  func.func @transform_5(%arg0: i32) -> (i32, i32) {
    %c0_i32 = arith.constant 0 : i32
    %c0_i32_0 = arith.constant 0 : i32
    return %arg0, %c0_i32 : i32, i32
  }
}

</mosaic_0001>

<llo_original>
// kernel: resnet_dense_forward.1
$region0: #{resnet_dense_forward.1}
  #allocation0 [shape = 'u32[]', space=smem, size = 0x4, offset = 0x4, fixed_abs, tag = 'smem constant byte address 0x4 - core index']
  #allocation1 [shape = 'u32[144,128]{1,0:T(1,128)}', space=vmem, size = 0x12000, scoped, tag = 'internal scratch']
  %s0 = inlined_call_operand.hbm [shape: f32[16,128], index: 0, kind: input, shape index: {}]
  %s1 = inlined_call_operand.hbm [shape: bf16[128,128], index: 1, kind: input, shape index: {}]
  %s2 = inlined_call_operand.vmem [shape: f32[1,128], index: 2, kind: input, shape index: {}]
  %s3 = inlined_call_operand.hbm [shape: bf16[3,128,128], index: 3, kind: input, shape index: {}]
  %s4 = inlined_call_operand.vmem [shape: f32[3,1,128], index: 4, kind: input, shape index: {}]
  %s5 = inlined_call_operand.hbm [shape: f32[16,128], index: 5, kind: output, shape index: {}]
  %s6 = sld [smem:[#allocation0]]
  $region42: #{resnet_dense_forward.1} parent=0
    _
  %s8 = ssub.s32 1, %s6
  %s9 = scalar_select 0, %s8, %s6
  $region1: #{resnet_dense_forward.1} parent=0
    #allocation2 [shape = 'u8[8192]{0}', space=vmem, size = 0x2000, scoped, tag = 'input window, operand 0, single buffered']
    #allocation3 [shape = 's32[1]{0}', space=sflag, size = 0x4, scoped, tag = 'scoped memory for resnet_dense_forward.1']
    #allocation4 [shape = 's32[1]{0}', space=sflag, size = 0x4, scoped, tag = 'scoped memory for resnet_dense_forward.1']
    #allocation5 [shape = 'u8[32768]{0}', space=vmem, size = 0x8000, scoped, tag = 'input window, operand 1, single buffered']
    #allocation6 [shape = 's32[1]{0}', space=sflag, size = 0x4, scoped, tag = 'scoped memory for resnet_dense_forward.1']
    #allocation7 [shape = 'u8[98304]{0}', space=vmem, size = 0x18000, scoped, tag = 'input window, operand 3, single buffered']
    #allocation8 [shape = 'u8[8192]{0}', space=vmem, size = 0x2000, scoped, tag = 'output window, operand 0, single buffered']
    %10 = vsyncpa [#allocation3], 0
    %11 = vsyncpa [#allocation6], 0
    %12 = vsyncpa [#allocation4], 0
    // Predicated region
    $region2: #{resnet_dense_forward.1} parent=1 // pred_check
      _
    $region3: #{resnet_dense_forward.1} parent=1 // pred_check_branch
      %14 = sbr.rel (0) target = $region5
    $region4: #{resnet_dense_forward.1} parent=1 // pred_region
      %s16 = ssub.s32 256, 256
      %17 = vsyncadd [#allocation3], %s16
      %s18 = sshll.u32 [#allocation2], 4
      %s19 = int_to_ptr.vmem [resolvable:$true] %s18
      %24 = dma.hbm_to_vmem [thread:$0]  %s0, 256, %s19, [#allocation3], 128, 128, 8
    $region5: #{resnet_dense_forward.1} parent=1 // pred_fallthru
      _
    // Predicated region
    $region6: #{resnet_dense_forward.1} parent=1 // pred_check
      _
    $region7: #{resnet_dense_forward.1} parent=1 // pred_check_branch
      %26 = sbr.rel (0) target = $region9
    $region8: #{resnet_dense_forward.1} parent=1 // pred_region
      %s28 = ssub.s32 1024, 1024
      %29 = vsyncadd [#allocation6], %s28
      %s30 = sshll.u32 [#allocation5], 4
      %s31 = int_to_ptr.vmem [resolvable:$true] %s30
      %36 = dma.hbm_to_vmem [thread:$0]  %s1, 1024, %s31, [#allocation6], 64, 64, 4
    $region9: #{resnet_dense_forward.1} parent=1 // pred_fallthru
      _
    // Predicated region
    $region10: #{resnet_dense_forward.1} parent=1 // pred_check
      _
    $region11: #{resnet_dense_forward.1} parent=1 // pred_check_branch
      %38 = sbr.rel (0) target = $region13
    $region12: #{resnet_dense_forward.1} parent=1 // pred_region
      _
    $region13: #{resnet_dense_forward.1} parent=1 // pred_fallthru
      _
    // Predicated region
    $region14: #{resnet_dense_forward.1} parent=1 // pred_check
      _
    $region15: #{resnet_dense_forward.1} parent=1 // pred_check_branch
      %40 = sbr.rel (0) target = $region17
    $region16: #{resnet_dense_forward.1} parent=1 // pred_region
      %s42 = ssub.s32 3072, 3072
      %43 = vsyncadd [#allocation6], %s42
      %s44 = sshll.u32 [#allocation7], 4
      %s45 = int_to_ptr.vmem [resolvable:$true] %s44
      %50 = dma.hbm_to_vmem [thread:$0]  %s3, 3072, %s45, [#allocation6], 64, 64, 4
    $region17: #{resnet_dense_forward.1} parent=1 // pred_fallthru
      _
    // Predicated region
    $region18: #{resnet_dense_forward.1} parent=1 // pred_check
      _
    $region19: #{resnet_dense_forward.1} parent=1 // pred_check_branch
      %52 = sbr.rel (0) target = $region21
    $region20: #{resnet_dense_forward.1} parent=1 // pred_region
      _
    $region21: #{resnet_dense_forward.1} parent=1 // pred_fallthru
      _
    // Predicated region
    $region22: #{resnet_dense_forward.1} parent=1 // pred_check
      _
    $region23: #{resnet_dense_forward.1} parent=1 // pred_check_branch
      %54 = sbr.rel (0) target = $region25
    $region24: #{resnet_dense_forward.1} parent=1 // pred_region
      %55 = dma.done [#allocation3], 256
    $region25: #{resnet_dense_forward.1} parent=1 // pred_fallthru
      _
    // Predicated region
    $region26: #{resnet_dense_forward.1} parent=1 // pred_check
      _
    $region27: #{resnet_dense_forward.1} parent=1 // pred_check_branch
      %57 = sbr.rel (0) target = $region29
    $region28: #{resnet_dense_forward.1} parent=1 // pred_region
      %58 = dma.done [#allocation6], 1024
    $region29: #{resnet_dense_forward.1} parent=1 // pred_fallthru
      _
    // Predicated region
    $region30: #{resnet_dense_forward.1} parent=1 // pred_check
      _
    $region31: #{resnet_dense_forward.1} parent=1 // pred_check_branch
      %60 = sbr.rel (0) target = $region33
    $region32: #{resnet_dense_forward.1} parent=1 // pred_region
      %61 = dma.done [#allocation6], 3072
    $region33: #{resnet_dense_forward.1} parent=1 // pred_fallthru
      _
    %v63 = vld [vmem:[#allocation2] sm:$0xff]
    %v64 = vld [vmem:[#allocation2 + $0x8] sm:$0xff]
    %v65 = vpack.c.bf16 %v64, %v63
    %v66 = vld [vmem:[#allocation5] sm:$0xf]
    %v67 = vld [vmem:[#allocation5 + $0x4] sm:$0xf]
    %v68 = vld [vmem:[#allocation5 + $0x8] sm:$0xf]
    %v69 = vld [vmem:[#allocation5 + $0xc] sm:$0xf]
    %v70 = vld [vmem:[#allocation5 + $0x10] sm:$0xf]
    %v71 = vld [vmem:[#allocation5 + $0x14] sm:$0xf]
    %v72 = vld [vmem:[#allocation5 + $0x18] sm:$0xf]
    %v73 = vld [vmem:[#allocation5 + $0x1c] sm:$0xf]
    %v74 = vld [vmem:[#allocation5 + $0x20] sm:$0xf]
    %v75 = vld [vmem:[#allocation5 + $0x24] sm:$0xf]
    %v76 = vld [vmem:[#allocation5 + $0x28] sm:$0xf]
    %v77 = vld [vmem:[#allocation5 + $0x2c] sm:$0xf]
    %v78 = vld [vmem:[#allocation5 + $0x30] sm:$0xf]
    %v79 = vld [vmem:[#allocation5 + $0x34] sm:$0xf]
    %v80 = vld [vmem:[#allocation5 + $0x38] sm:$0xf]
    %v81 = vld [vmem:[#allocation5 + $0x3c] sm:$0xf]
    %v82 = vld [vmem:[%s2] sm:$0x1]
    %v84 = vlaneseq
    %v85 = vshrl.u32 %v84, 7
    %v86 = vsub.s32 0, %v85
    %v87 = vrot.slane %v82, %v86
    %v105 = vunpack.c.l.b16 %v66
    %v106 = vunpack.c.l.b16 %v67
    %v107 = vunpack.c.l.b16 %v68
    %v108 = vunpack.c.l.b16 %v69
    %v109 = vunpack.c.l.b16 %v70
    %v110 = vunpack.c.l.b16 %v71
    %v111 = vunpack.c.l.b16 %v72
    %v112 = vunpack.c.l.b16 %v73
    %v113 = vunpack.c.l.b16 %v74
    %v114 = vunpack.c.l.b16 %v75
    %v115 = vunpack.c.l.b16 %v76
    %v116 = vunpack.c.l.b16 %v77
    %v117 = vunpack.c.l.b16 %v78
    %v118 = vunpack.c.l.b16 %v79
    %v119 = vunpack.c.l.b16 %v80
    %v120 = vunpack.c.l.b16 %v81
    %v121 = vpack.c.b16 %v106, %v105
    %v122 = vpack.c.b16 %v108, %v107
    %v123 = vpack.c.b16 %v110, %v109
    %v124 = vpack.c.b16 %v112, %v111
    %v125 = vpack.c.b16 %v114, %v113
    %v126 = vpack.c.b16 %v116, %v115
    %v127 = vpack.c.b16 %v118, %v117
    %v128 = vpack.c.b16 %v120, %v119
    %137 = vmatprep.subr.bf16.mxu0 0
    %138 = vmatpush1.bf16.msra.mxu0 %v121
    %139 = vmatprep.subr.bf16.mxu0 0
    %140 = vmatpush1.bf16.msra.mxu0 %v122
    %141 = vmatprep.subr.bf16.mxu0 0
    %142 = vmatpush1.bf16.msra.mxu0 %v123
    %143 = vmatprep.subr.bf16.mxu0 0
    %144 = vmatpush1.bf16.msra.mxu0 %v124
    %145 = vmatprep.subr.bf16.mxu0 0
    %146 = vmatpush1.bf16.msra.mxu0 %v125
    %147 = vmatprep.subr.bf16.mxu0 0
    %148 = vmatpush1.bf16.msra.mxu0 %v126
    %149 = vmatprep.subr.bf16.mxu0 0
    %150 = vmatpush1.bf16.msra.mxu0 %v127
    %151 = vmatprep.subr.bf16.mxu0 0
    %152 = vmatpush1.bf16.msra.mxu0 %v128
    %153 = vmatprep.subr.bf16.mxu0 0
    %154 = vmatpush1.bf16.msra.mxu0 0
    %155 = vmatprep.subr.bf16.mxu0 0
    %156 = vmatpush1.bf16.msra.mxu0 0
    %157 = vmatprep.subr.bf16.mxu0 0
    %158 = vmatpush1.bf16.msra.mxu0 0
    %159 = vmatprep.subr.bf16.mxu0 0
    %160 = vmatpush1.bf16.msra.mxu0 0
    %161 = vmatprep.subr.bf16.mxu0 0
    %162 = vmatpush1.bf16.msra.mxu0 0
    %163 = vmatprep.subr.bf16.mxu0 0
    %164 = vmatpush1.bf16.msra.mxu0 0
    %165 = vmatprep.subr.bf16.mxu0 0
    %166 = vmatpush1.bf16.msra.mxu0 0
    %167 = vmatprep.subr.bf16.mxu0 0
    %168 = vmatpush1.bf16.msra.mxu0 0
    %169 = vmatprep.mubr.bf16.mxu0 0
    %170 = vmatmul.mubr.bf16.gmra.mrb[0].mxu0 %v65
    %v171 = vpop.f32.mrb[0].mxu0
    %v172 = vadd.f32 %v87, %v171
    %v173 = vpop.f32.mrb[0].mxu0
    %v174 = vpop.f32.mrb[0].mxu0
    %v175 = vadd.f32 %v87, %v174
    %v176 = vpop.f32.mrb[0].mxu0
    %177 = vdwg.mxu0
    %v178 = vld [vmem:[#allocation7] sm:$0xf]
    %v179 = vld [vmem:[#allocation7 + $0x4] sm:$0xf]
    %v180 = vld [vmem:[#allocation7 + $0x8] sm:$0xf]
    %v181 = vld [vmem:[#allocation7 + $0xc] sm:$0xf]
    %v182 = vld [vmem:[#allocation7 + $0x10] sm:$0xf]
    %v183 = vld [vmem:[#allocation7 + $0x14] sm:$0xf]
    %v184 = vld [vmem:[#allocation7 + $0x18] sm:$0xf]
    %v185 = vld [vmem:[#allocation7 + $0x1c] sm:$0xf]
    %v186 = vld [vmem:[#allocation7 + $0x20] sm:$0xf]
    %v187 = vld [vmem:[#allocation7 + $0x24] sm:$0xf]
    %v188 = vld [vmem:[#allocation7 + $0x28] sm:$0xf]
    %v189 = vld [vmem:[#allocation7 + $0x2c] sm:$0xf]
    %v190 = vld [vmem:[#allocation7 + $0x30] sm:$0xf]
    %v191 = vld [vmem:[#allocation7 + $0x34] sm:$0xf]
    %v192 = vld [vmem:[#allocation7 + $0x38] sm:$0xf]
    %v193 = vld [vmem:[#allocation7 + $0x3c] sm:$0xf]
    %v194 = vld [vmem:[%s4] sm:$0x1]
    %v196 = vlaneseq
    %v197 = vshrl.u32 %v196, 7
    %v198 = vsub.s32 0, %v197
    %v199 = vrot.slane %v194, %v198
    %v217 = vunpack.c.l.b16 %v178
    %v218 = vunpack.c.l.b16 %v179
    %v219 = vunpack.c.l.b16 %v180
    %v220 = vunpack.c.l.b16 %v181
    %v221 = vunpack.c.l.b16 %v182
    %v222 = vunpack.c.l.b16 %v183
    %v223 = vunpack.c.l.b16 %v184
    %v224 = vunpack.c.l.b16 %v185
    %v225 = vunpack.c.l.b16 %v186
    %v226 = vunpack.c.l.b16 %v187
    %v227 = vunpack.c.l.b16 %v188
    %v228 = vunpack.c.l.b16 %v189
    %v229 = vunpack.c.l.b16 %v190
    %v230 = vunpack.c.l.b16 %v191
    %v231 = vunpack.c.l.b16 %v192
    %v232 = vunpack.c.l.b16 %v193
    %v233 = vpack.c.b16 %v218, %v217
    %v234 = vpack.c.b16 %v220, %v219
    %v235 = vpack.c.b16 %v222, %v221
    %v236 = vpack.c.b16 %v224, %v223
    %v237 = vpack.c.b16 %v226, %v225
    %v238 = vpack.c.b16 %v228, %v227
    %v239 = vpack.c.b16 %v230, %v229
    %v240 = vpack.c.b16 %v232, %v231
    %249 = vmatprep.subr.bf16.mxu0 0
    %250 = vmatpush1.bf16.msra.mxu0 %v233
    %251 = vmatprep.subr.bf16.mxu0 0
    %252 = vmatpush1.bf16.msra.mxu0 %v234
    %253 = vmatprep.subr.bf16.mxu0 0
    %254 = vmatpush1.bf16.msra.mxu0 %v235
    %255 = vmatprep.subr.bf16.mxu0 0
    %256 = vmatpush1.bf16.msra.mxu0 %v236
    %257 = vmatprep.subr.bf16.mxu0 0
    %258 = vmatpush1.bf16.msra.mxu0 %v237
    %259 = vmatprep.subr.bf16.mxu0 0
    %260 = vmatpush1.bf16.msra.mxu0 %v238
    %261 = vmatprep.subr.bf16.mxu0 0
    %262 = vmatpush1.bf16.msra.mxu0 %v239
    %263 = vmatprep.subr.bf16.mxu0 0
    %264 = vmatpush1.bf16.msra.mxu0 %v240
    %265 = vmatprep.subr.bf16.mxu0 0
    %266 = vmatpush1.bf16.msra.mxu0 0
    %267 = vmatprep.subr.bf16.mxu0 0
    %268 = vmatpush1.bf16.msra.mxu0 0
    %269 = vmatprep.subr.bf16.mxu0 0
    %270 = vmatpush1.bf16.msra.mxu0 0
    %271 = vmatprep.subr.bf16.mxu0 0
    %272 = vmatpush1.bf16.msra.mxu0 0
    %273 = vmatprep.subr.bf16.mxu0 0
    %274 = vmatpush1.bf16.msra.mxu0 0
    %275 = vmatprep.subr.bf16.mxu0 0
    %276 = vmatpush1.bf16.msra.mxu0 0
    %277 = vmatprep.subr.bf16.mxu0 0
    %278 = vmatpush1.bf16.msra.mxu0 0
    %279 = vmatprep.subr.bf16.mxu0 0
    %280 = vmatpush1.bf16.msra.mxu0 0
    %281 = vmatprep.mubr.bf16.mxu0 0
    %282 = vmatmul.mubr.bf16.gmra.mrb[0].mxu0 %v65
    %v283 = vpop.f32.mrb[0].mxu0
    %v284 = vadd.f32 %v199, %v283
    %v285 = vpop.f32.mrb[0].mxu0
    %v286 = vpop.f32.mrb[0].mxu0
    %v287 = vadd.f32 %v199, %v286
    %v288 = vpop.f32.mrb[0].mxu0
    %289 = vdwg.mxu0
    %v290 = vmul.f32 %v284, 0.01
    %v291 = vmul.f32 %v287, 0.01
    %v292 = vmax.f32 %v284, %v290
    %v293 = vmax.f32 %v287, %v291
    %s294 = scalar_lea.vmem [#allocation7], 64
    %v295 = vld [vmem:[%s294] sm:$0xf]
    %v296 = vld [vmem:[%s294 + $0x4] sm:$0xf]
    %v297 = vld [vmem:[%s294 + $0x8] sm:$0xf]
    %v298 = vld [vmem:[%s294 + $0xc] sm:$0xf]
    %v299 = vld [vmem:[%s294 + $0x10] sm:$0xf]
    %v300 = vld [vmem:[%s294 + $0x14] sm:$0xf]
    %v301 = vld [vmem:[%s294 + $0x18] sm:$0xf]
    %v302 = vld [vmem:[%s294 + $0x1c] sm:$0xf]
    %v303 = vld [vmem:[%s294 + $0x20] sm:$0xf]
    %v304 = vld [vmem:[%s294 + $0x24] sm:$0xf]
    %v305 = vld [vmem:[%s294 + $0x28] sm:$0xf]
    %v306 = vld [vmem:[%s294 + $0x2c] sm:$0xf]
    %v307 = vld [vmem:[%s294 + $0x30] sm:$0xf]
    %v308 = vld [vmem:[%s294 + $0x34] sm:$0xf]
    %v309 = vld [vmem:[%s294 + $0x38] sm:$0xf]
    %v310 = vld [vmem:[%s294 + $0x3c] sm:$0xf]
    %s311 = scalar_lea.vmem %s4, 1
    %v312 = vld [vmem:[%s311] sm:$0x1]
    %v313 = vpack.c.bf16 %v293, %v292
    %v315 = vlaneseq
    %v316 = vshrl.u32 %v315, 7
    %v317 = vsub.s32 0, %v316
    %v318 = vrot.slane %v312, %v317
    %v336 = vunpack.c.l.b16 %v295
    %v337 = vunpack.c.l.b16 %v296
    %v338 = vunpack.c.l.b16 %v297
    %v339 = vunpack.c.l.b16 %v298
    %v340 = vunpack.c.l.b16 %v299
    %v341 = vunpack.c.l.b16 %v300
    %v342 = vunpack.c.l.b16 %v301
    %v343 = vunpack.c.l.b16 %v302
    %v344 = vunpack.c.l.b16 %v303
    %v345 = vunpack.c.l.b16 %v304
    %v346 = vunpack.c.l.b16 %v305
    %v347 = vunpack.c.l.b16 %v306
    %v348 = vunpack.c.l.b16 %v307
    %v349 = vunpack.c.l.b16 %v308
    %v350 = vunpack.c.l.b16 %v309
    %v351 = vunpack.c.l.b16 %v310
    %v352 = vpack.c.b16 %v337, %v336
    %v353 = vpack.c.b16 %v339, %v338
    %v354 = vpack.c.b16 %v341, %v340
    %v355 = vpack.c.b16 %v343, %v342
    %v356 = vpack.c.b16 %v345, %v344
    %v357 = vpack.c.b16 %v347, %v346
    %v358 = vpack.c.b16 %v349, %v348
    %v359 = vpack.c.b16 %v351, %v350
    %368 = vmatprep.subr.bf16.mxu0 0
    %369 = vmatpush1.bf16.msra.mxu0 %v352
    %370 = vmatprep.subr.bf16.mxu0 0
    %371 = vmatpush1.bf16.msra.mxu0 %v353
    %372 = vmatprep.subr.bf16.mxu0 0
    %373 = vmatpush1.bf16.msra.mxu0 %v354
    %374 = vmatprep.subr.bf16.mxu0 0
    %375 = vmatpush1.bf16.msra.mxu0 %v355
    %376 = vmatprep.subr.bf16.mxu0 0
    %377 = vmatpush1.bf16.msra.mxu0 %v356
    %378 = vmatprep.subr.bf16.mxu0 0
    %379 = vmatpush1.bf16.msra.mxu0 %v357
    %380 = vmatprep.subr.bf16.mxu0 0
    %381 = vmatpush1.bf16.msra.mxu0 %v358
    %382 = vmatprep.subr.bf16.mxu0 0
    %383 = vmatpush1.bf16.msra.mxu0 %v359
    %384 = vmatprep.subr.bf16.mxu0 0
    %385 = vmatpush1.bf16.msra.mxu0 0
    %386 = vmatprep.subr.bf16.mxu0 0
    %387 = vmatpush1.bf16.msra.mxu0 0
    %388 = vmatprep.subr.bf16.mxu0 0
    %389 = vmatpush1.bf16.msra.mxu0 0
    %390 = vmatprep.subr.bf16.mxu0 0
    %391 = vmatpush1.bf16.msra.mxu0 0
    %392 = vmatprep.subr.bf16.mxu0 0
    %393 = vmatpush1.bf16.msra.mxu0 0
    %394 = vmatprep.subr.bf16.mxu0 0
    %395 = vmatpush1.bf16.msra.mxu0 0
    %396 = vmatprep.subr.bf16.mxu0 0
    %397 = vmatpush1.bf16.msra.mxu0 0
    %398 = vmatprep.subr.bf16.mxu0 0
    %399 = vmatpush1.bf16.msra.mxu0 0
    %400 = vmatprep.mubr.bf16.mxu0 0
    %401 = vmatmul.mubr.bf16.gmra.mrb[0].mxu0 %v313
    %v402 = vpop.f32.mrb[0].mxu0
    %v403 = vadd.f32 %v318, %v402
    %v404 = vpop.f32.mrb[0].mxu0
    %v405 = vpop.f32.mrb[0].mxu0
    %v406 = vadd.f32 %v318, %v405
    %v407 = vpop.f32.mrb[0].mxu0
    %408 = vdwg.mxu0
    %v409 = vmul.f32 %v403, 0.01
    %v410 = vmul.f32 %v406, 0.01
    %v411 = vmax.f32 %v403, %v409
    %v412 = vmax.f32 %v406, %v410
    %s413 = scalar_lea.vmem [#allocation7], 128
    %v414 = vld [vmem:[%s413] sm:$0xf]
    %v415 = vld [vmem:[%s413 + $0x4] sm:$0xf]
    %v416 = vld [vmem:[%s413 + $0x8] sm:$0xf]
    %v417 = vld [vmem:[%s413 + $0xc] sm:$0xf]
    %v418 = vld [vmem:[%s413 + $0x10] sm:$0xf]
    %v419 = vld [vmem:[%s413 + $0x14] sm:$0xf]
    %v420 = vld [vmem:[%s413 + $0x18] sm:$0xf]
    %v421 = vld [vmem:[%s413 + $0x1c] sm:$0xf]
    %v422 = vld [vmem:[%s413 + $0x20] sm:$0xf]
    %v423 = vld [vmem:[%s413 + $0x24] sm:$0xf]
    %v424 = vld [vmem:[%s413 + $0x28] sm:$0xf]
    %v425 = vld [vmem:[%s413 + $0x2c] sm:$0xf]
    %v426 = vld [vmem:[%s413 + $0x30] sm:$0xf]
    %v427 = vld [vmem:[%s413 + $0x34] sm:$0xf]
    %v428 = vld [vmem:[%s413 + $0x38] sm:$0xf]
    %v429 = vld [vmem:[%s413 + $0x3c] sm:$0xf]
    %s430 = scalar_lea.vmem %s4, 2
    %v431 = vld [vmem:[%s430] sm:$0x1]
    %v432 = vpack.c.bf16 %v412, %v411
    %v434 = vlaneseq
    %v435 = vshrl.u32 %v434, 7
    %v436 = vsub.s32 0, %v435
    %v437 = vrot.slane %v431, %v436
    %v455 = vunpack.c.l.b16 %v414
    %v456 = vunpack.c.l.b16 %v415
    %v457 = vunpack.c.l.b16 %v416
    %v458 = vunpack.c.l.b16 %v417
    %v459 = vunpack.c.l.b16 %v418
    %v460 = vunpack.c.l.b16 %v419
    %v461 = vunpack.c.l.b16 %v420
    %v462 = vunpack.c.l.b16 %v421
    %v463 = vunpack.c.l.b16 %v422
    %v464 = vunpack.c.l.b16 %v423
    %v465 = vunpack.c.l.b16 %v424
    %v466 = vunpack.c.l.b16 %v425
    %v467 = vunpack.c.l.b16 %v426
    %v468 = vunpack.c.l.b16 %v427
    %v469 = vunpack.c.l.b16 %v428
    %v470 = vunpack.c.l.b16 %v429
    %v471 = vpack.c.b16 %v456, %v455
    %v472 = vpack.c.b16 %v458, %v457
    %v473 = vpack.c.b16 %v460, %v459
    %v474 = vpack.c.b16 %v462, %v461
    %v475 = vpack.c.b16 %v464, %v463
    %v476 = vpack.c.b16 %v466, %v465
    %v477 = vpack.c.b16 %v468, %v467
    %v478 = vpack.c.b16 %v470, %v469
    %487 = vmatprep.subr.bf16.mxu0 0
    %488 = vmatpush1.bf16.msra.mxu0 %v471
    %489 = vmatprep.subr.bf16.mxu0 0
    %490 = vmatpush1.bf16.msra.mxu0 %v472
    %491 = vmatprep.subr.bf16.mxu0 0
    %492 = vmatpush1.bf16.msra.mxu0 %v473
    %493 = vmatprep.subr.bf16.mxu0 0
    %494 = vmatpush1.bf16.msra.mxu0 %v474
    %495 = vmatprep.subr.bf16.mxu0 0
    %496 = vmatpush1.bf16.msra.mxu0 %v475
    %497 = vmatprep.subr.bf16.mxu0 0
    %498 = vmatpush1.bf16.msra.mxu0 %v476
    %499 = vmatprep.subr.bf16.mxu0 0
    %500 = vmatpush1.bf16.msra.mxu0 %v477
    %501 = vmatprep.subr.bf16.mxu0 0
    %502 = vmatpush1.bf16.msra.mxu0 %v478
    %503 = vmatprep.subr.bf16.mxu0 0
    %504 = vmatpush1.bf16.msra.mxu0 0
    %505 = vmatprep.subr.bf16.mxu0 0
    %506 = vmatpush1.bf16.msra.mxu0 0
    %507 = vmatprep.subr.bf16.mxu0 0
    %508 = vmatpush1.bf16.msra.mxu0 0
    %509 = vmatprep.subr.bf16.mxu0 0
    %510 = vmatpush1.bf16.msra.mxu0 0
    %511 = vmatprep.subr.bf16.mxu0 0
    %512 = vmatpush1.bf16.msra.mxu0 0
    %513 = vmatprep.subr.bf16.mxu0 0
    %514 = vmatpush1.bf16.msra.mxu0 0
    %515 = vmatprep.subr.bf16.mxu0 0
    %516 = vmatpush1.bf16.msra.mxu0 0
    %517 = vmatprep.subr.bf16.mxu0 0
    %518 = vmatpush1.bf16.msra.mxu0 0
    %519 = vmatprep.mubr.bf16.mxu0 0
    %520 = vmatmul.mubr.bf16.gmra.mrb[0].mxu0 %v432
    %v521 = vpop.f32.mrb[0].mxu0
    %v522 = vadd.f32 %v437, %v521
    %v523 = vpop.f32.mrb[0].mxu0
    %v524 = vpop.f32.mrb[0].mxu0
    %v525 = vadd.f32 %v437, %v524
    %v526 = vpop.f32.mrb[0].mxu0
    %527 = vdwg.mxu0
    %v528 = vmul.f32 %v522, 0.01
    %v529 = vmul.f32 %v525, 0.01
    %v530 = vmax.f32 %v522, %v528
    %v531 = vmax.f32 %v525, %v529
    %v532 = vadd.f32 %v172, %v530
    %v533 = vadd.f32 %v175, %v531
    %534 = vst [vmem:[#allocation8] sm:$0xff] %v532
    %535 = vst [vmem:[#allocation8 + $0x8] sm:$0xff] %v533
    // Predicated region
    $region34: #{resnet_dense_forward.1} parent=1 // pred_check
      _
    $region35: #{resnet_dense_forward.1} parent=1 // pred_check_branch
      %537 = sbr.rel (0) target = $region37
    $region36: #{resnet_dense_forward.1} parent=1 // pred_region
      %s539 = ssub.s32 256, 256
      %540 = vsyncadd [#allocation4], %s539
      %s541 = sshll.u32 [#allocation8], 4
      %s542 = int_to_ptr.vmem [resolvable:$true] %s541
      %547 = dma.vmem_to_hbm [thread:$0]  %s542, 256, %s5, [#allocation4], 128, 128, 8
    $region37: #{resnet_dense_forward.1} parent=1 // pred_fallthru
      _
    // Predicated region
    $region38: #{resnet_dense_forward.1} parent=1 // pred_check
      _
    $region39: #{resnet_dense_forward.1} parent=1 // pred_check_branch
      %549 = sbr.rel (0) target = $region41
    $region40: #{resnet_dense_forward.1} parent=1 // pred_region
      %550 = dma.done [#allocation4], 256
    $region41: #{resnet_dense_forward.1} parent=1 // pred_fallthru
      _
    %551 = vsyncpa [#allocation3], 1
    %552 = vsyncpa [#allocation6], 1
    %553 = vsyncpa [#allocation4], 1

</llo_original>
